<compile_context>
chip_gen: v6e
topology: v6e:2x2x1
jax: 0.10.0
libtpu: 0.0.40
codegen_flags: <defaults>
</compile_context>

<pallas_src>
import functools
import math

import jax
import jax.numpy as jnp
from jax.experimental import pallas as pl
from jax.experimental.pallas import tpu as pltpu

_LANES = 128
_SUBLANES = 8
_HIDDEN1 = 32      # fc1 out_features
_HIDDEN2 = 64      # fc2 out_features
_HIDDEN_W = 128    # lane width used for all hidden activations / W1 / W2


def _round_up(x, m):
    return ((x + m - 1) // m) * m


def _decoder_kernel(x_ref, wh_ref, w3_ref, bh_ref, b3_ref, o_ref, *,
                    latent_dim, latent_pad, output_dim, out_width):
    """One batch tile of the 3-layer MLP.

    Hidden weight slab (wh_ref), 128 lanes wide:
        rows [0          : latent_dim          ] -> W1 (latent_dim, 32), cols >=32 zero
        rows [latent_pad : latent_pad + 128    ] -> W2 (32, 64) in rows[:32]/cols[:64], rest zero
    Last layer (w3_ref): (128, out_width), real values in rows[:64], cols[:output_dim].
    Padded weight columns / bias lanes are zero, so padded activation lanes
    stay exactly 0 through ReLU and the result matches the unpadded model.
    """
    x = x_ref[...]                                           # (TB, latent_dim)

    w1 = wh_ref[0:latent_dim, :]                             # (latent_dim, 128)
    w2 = wh_ref[latent_pad:latent_pad + _HIDDEN_W, :]        # (128, 128)
    b1 = bh_ref[0:1, :]                                      # (1, 128)
    b2 = bh_ref[1:2, :]                                      # (1, 128)

    h = jnp.maximum(jnp.dot(x, w1, preferred_element_type=jnp.float32) + b1, 0.0)
    h = jnp.maximum(jnp.dot(h, w2, preferred_element_type=jnp.float32) + b2, 0.0)
    y = jnp.dot(h, w3_ref[...], preferred_element_type=jnp.float32) + b3_ref[...]

    if output_dim != out_width:
        y = y[:, :output_dim]                                # lane mask, no extra pass
    o_ref[...] = y.astype(o_ref.dtype)                       # (TB, output_dim) store


def init_decoder_params(key, latent_dim, output_dim):
    """torch.nn.Linear-style init (uniform +/- 1/sqrt(fan_in)), packed into
    zero-padded slabs laid out for the kernel."""
    latent_pad = _round_up(latent_dim, _SUBLANES)
    out_width = _round_up(output_dim, _LANES)

    wh = jnp.zeros((latent_pad + _HIDDEN_W, _HIDDEN_W), jnp.float32)
    w3 = jnp.zeros((_HIDDEN_W, out_width), jnp.float32)
    bh = jnp.zeros((_SUBLANES, _HIDDEN_W), jnp.float32)
    b3 = jnp.zeros((1, out_width), jnp.float32)

    def linear(kw, kb, fan_in, fan_out):
        bound = 1.0 / math.sqrt(fan_in)
        w = jax.random.uniform(kw, (fan_in, fan_out), jnp.float32,
                               minval=-bound, maxval=bound)
        b = jax.random.uniform(kb, (fan_out,), jnp.float32,
                               minval=-bound, maxval=bound)
        return w, b

    key, k1w, k1b, k2w, k2b, k3w, k3b = jax.random.split(key, 7)
    w1, b1 = linear(k1w, k1b, latent_dim, _HIDDEN1)
    w2, b2 = linear(k2w, k2b, _HIDDEN1, _HIDDEN2)
    w3r, b3r = linear(k3w, k3b, _HIDDEN2, output_dim)

    wh = wh.at[0:latent_dim, 0:_HIDDEN1].set(w1)
    wh = wh.at[latent_pad:latent_pad + _HIDDEN1, 0:_HIDDEN2].set(w2)
    w3 = w3.at[0:_HIDDEN2, 0:output_dim].set(w3r)
    bh = bh.at[0, 0:_HIDDEN1].set(b1)
    bh = bh.at[1, 0:_HIDDEN2].set(b2)
    b3 = b3.at[0, 0:output_dim].set(b3r)

    return {
        "wh": wh, "w3": w3, "bh": bh, "b3": b3,
        "latent_dim": latent_dim, "latent_pad": latent_pad,
        "output_dim": output_dim, "out_width": out_width,
        # unpadded copies, only used by the reference check
        "raw": {"w1": w1, "b1": b1, "w2": w2, "b2": b2, "w3": w3r, "b3": b3r},
    }


def _pick_batch_tile(B, block_b):
    """Batch tile: multiple of 8, capped at block_b, and split into >=2 grid
    steps for mid-size batches so v7x's two TensorCores both get work."""
    tb = min(block_b, _round_up(B, _SUBLANES))
    if B > 2 * _SUBLANES:
        tb = min(tb, _round_up(pl.cdiv(B, 2), _SUBLANES))
    return tb


def decoder_forward(latent, params, *, block_b=4096):
    """latent: (B, latent_dim) f32.  Returns (B, output_dim) f32."""
    B, latent_dim = latent.shape
    assert latent_dim == params["latent_dim"]
    latent_pad = params["latent_pad"]
    output_dim = params["output_dim"]
    out_width = params["out_width"]

    tb = _pick_batch_tile(B, block_b)
    bp = _round_up(B, tb)
    if bp != B:
        latent = jnp.pad(latent, ((0, bp - B), (0, 0)))

    kernel = functools.partial(
        _decoder_kernel, latent_dim=latent_dim, latent_pad=latent_pad,
        output_dim=output_dim, out_width=out_width)

    out = pl.pallas_call(
        kernel,
        out_shape=jax.ShapeDtypeStruct((bp, output_dim), jnp.float32),
        grid_spec=pltpu.PrefetchScalarGridSpec(
            num_scalar_prefetch=0,
            grid=(bp // tb,),
            in_specs=[
                pl.BlockSpec((tb, latent_dim), lambda i: (i, 0)),        # batch-tiled
                pl.BlockSpec(params["wh"].shape, lambda i: (0, 0)),      # resident
                pl.BlockSpec(params["w3"].shape, lambda i: (0, 0)),      # resident
                pl.BlockSpec(params["bh"].shape, lambda i: (0, 0)),      # resident
                pl.BlockSpec(params["b3"].shape, lambda i: (0, 0)),      # resident
            ],
            out_specs=pl.BlockSpec((tb, output_dim), lambda i: (i, 0)),  # narrow output
        ),
        compiler_params=pltpu.CompilerParams(
            dimension_semantics=("parallel",)),  # shard batch across TCs on v7x
    )(latent, params["wh"], params["w3"], params["bh"], params["b3"])

    # Only a row-slice remains (and only when the batch needed padding).
    return out if bp == B else out[:B]


def _reference_forward(latent, raw):
    """Pure-JAX reference matching torch Decoder.forward."""
    x = jnp.maximum(latent @ raw["w1"] + raw["b1"], 0.0)
    x = jnp.maximum(x @ raw["w2"] + raw["b2"], 0.0)
    return x @ raw["w3"] + raw["b3"]


if __name__ == "__main__":
    latent_dim, output_dim = 16, 24

    key = jax.random.PRNGKey(0)
    key, k_lat, k_par, k_lat2 = jax.random.split(key, 4)
    params = init_decoder_params(k_par, latent_dim, output_dim)

    # Small demo batch (single grid step).
    batch = 8
    latent = jax.random.normal(k_lat, (batch, latent_dim), jnp.float32)
    out = jax.block_until_ready(decoder_forward(latent, params))
    ref = _reference_forward(latent, params["raw"])
    assert out.shape == (batch, output_dim)
    assert jnp.allclose(out, ref, atol=1e-5, rtol=1e-5)

    # Mid-size batch: exercises batch padding and a >=2-step "parallel" grid.
    batch2 = 300
    latent2 = jax.random.normal(k_lat2, (batch2, latent_dim), jnp.float32)
    out2 = jax.block_until_ready(decoder_forward(latent2, params))
    ref2 = _reference_forward(latent2, params["raw"])
    assert out2.shape == (batch2, output_dim)
    assert jnp.allclose(out2, ref2, atol=1e-5, rtol=1e-5)

    print("KERNEL_OK")
</pallas_src>

<mosaic_0001>
module attributes {stable_mosaic.version = 11 : i64} {
  func.func @_decoder_kernel(%arg0: i32, %arg1: memref<8x16xf32, #tpu.memory_space<vmem>>, %arg2: memref<144x128xf32, #tpu.memory_space<vmem>>, %arg3: memref<128x128xf32, #tpu.memory_space<vmem>>, %arg4: memref<8x128xf32, #tpu.memory_space<vmem>>, %arg5: memref<1x128xf32, #tpu.memory_space<vmem>>, %arg6: memref<8x24xf32, #tpu.memory_space<vmem>>) attributes {dimension_semantics = [#tpu.dimension_semantics<parallel>], iteration_bounds = array<i64: 1>, scalar_prefetch = 0 : i64, scratch_operands = 0 : i64, tpu.core_type = #tpu.core_type<tc>, window_params = [{transform_indices = @transform_0, window_bounds = array<i64: 8, 16>}, {pipeline_mode = #tpu.pipeline_mode<synchronous>, transform_indices = @transform_1, window_bounds = array<i64: 144, 128>}, {pipeline_mode = #tpu.pipeline_mode<synchronous>, transform_indices = @transform_2, window_bounds = array<i64: 128, 128>}, {pipeline_mode = #tpu.pipeline_mode<synchronous>, transform_indices = @transform_3, window_bounds = array<i64: 8, 128>}, {pipeline_mode = #tpu.pipeline_mode<synchronous>, transform_indices = @transform_4, window_bounds = array<i64: 1, 128>}, {transform_indices = @transform_5, window_bounds = array<i64: 8, 24>}]} {
    %c0 = arith.constant 0 : index
    %c0_0 = arith.constant 0 : index
    %0 = vector.load %arg1[%c0, %c0_0] : memref<8x16xf32, #tpu.memory_space<vmem>>, vector<8x16xf32>
    %c0_1 = arith.constant 0 : index
    %c0_2 = arith.constant 0 : index
    %1 = vector.load %arg2[%c0_1, %c0_2] : memref<144x128xf32, #tpu.memory_space<vmem>>, vector<16x128xf32>
    %c16 = arith.constant 16 : index
    %c0_3 = arith.constant 0 : index
    %2 = vector.load %arg2[%c16, %c0_3] : memref<144x128xf32, #tpu.memory_space<vmem>>, vector<128x128xf32>
    %c0_4 = arith.constant 0 : index
    %c0_5 = arith.constant 0 : index
    %3 = vector.load %arg4[%c0_4, %c0_5] : memref<8x128xf32, #tpu.memory_space<vmem>>, vector<1x128xf32>
    %c1 = arith.constant 1 : index
    %c0_6 = arith.constant 0 : index
    %4 = vector.load %arg4[%c1, %c0_6] : memref<8x128xf32, #tpu.memory_space<vmem>>, vector<1x128xf32>
    %cst = arith.constant dense<0.000000e+00> : vector<8x128xf32>
    %5 = tpu.matmul %0, %1, %cst {dimension_numbers = #tpu.dot_dimension_numbers<[1], [0], [0], [1], [0, 0, 1, 1], [], []>} : vector<8x16xf32>, vector<16x128xf32>, vector<8x128xf32> -> vector<8x128xf32>
    %6 = vector.broadcast %3 : vector<1x128xf32> to vector<8x128xf32>
    %7 = arith.addf %5, %6 : vector<8x128xf32>
    %cst_7 = arith.constant 0.000000e+00 : f32
    %8 = vector.broadcast %cst_7 : f32 to vector<8x128xf32>
    %9 = arith.maximumf %7, %8 : vector<8x128xf32>
    %cst_8 = arith.constant dense<0.000000e+00> : vector<8x128xf32>
    %10 = tpu.matmul %9, %2, %cst_8 {dimension_numbers = #tpu.dot_dimension_numbers<[1], [0], [0], [1], [0, 0, 1, 1], [], []>} : vector<8x128xf32>, vector<128x128xf32>, vector<8x128xf32> -> vector<8x128xf32>
    %11 = vector.broadcast %4 : vector<1x128xf32> to vector<8x128xf32>
    %12 = arith.addf %10, %11 : vector<8x128xf32>
    %cst_9 = arith.constant 0.000000e+00 : f32
    %13 = vector.broadcast %cst_9 : f32 to vector<8x128xf32>
    %14 = arith.maximumf %12, %13 : vector<8x128xf32>
    %c0_10 = arith.constant 0 : index
    %c0_11 = arith.constant 0 : index
    %15 = vector.load %arg3[%c0_10, %c0_11] : memref<128x128xf32, #tpu.memory_space<vmem>>, vector<128x128xf32>
    %cst_12 = arith.constant dense<0.000000e+00> : vector<8x128xf32>
    %16 = tpu.matmul %14, %15, %cst_12 {dimension_numbers = #tpu.dot_dimension_numbers<[1], [0], [0], [1], [0, 0, 1, 1], [], []>} : vector<8x128xf32>, vector<128x128xf32>, vector<8x128xf32> -> vector<8x128xf32>
    %c0_13 = arith.constant 0 : index
    %c0_14 = arith.constant 0 : index
    %17 = vector.load %arg5[%c0_13, %c0_14] : memref<1x128xf32, #tpu.memory_space<vmem>>, vector<1x128xf32>
    %18 = vector.broadcast %17 : vector<1x128xf32> to vector<8x128xf32>
    %19 = arith.addf %16, %18 : vector<8x128xf32>
    %20 = vector.extract_strided_slice %19 {offsets = [0, 0], sizes = [8, 24], strides = [1, 1]} : vector<8x128xf32> to vector<8x24xf32>
    %c0_15 = arith.constant 0 : index
    %c0_16 = arith.constant 0 : index
    %21 = vector.load %arg6[%c0_15, %c0_16] : memref<8x24xf32, #tpu.memory_space<vmem>>, vector<8x24xf32>
    tpu.vector_store %arg6[%c0_15, %c0_16], %20 {strides = array<i32>} : memref<8x24xf32, #tpu.memory_space<vmem>>, vector<8x24xf32>,
    return
  }
  func.func @transform_0(%arg0: i32) -> (i32, i32) {
    %c0_i32 = arith.constant 0 : i32
    %c0_i32_0 = arith.constant 0 : i32
    return %arg0, %c0_i32 : i32, i32
  }
  func.func @transform_1(%arg0: i32) -> (i32, i32) {
    %c0_i32 = arith.constant 0 : i32
    %c0_i32_0 = arith.constant 0 : i32
    %c0_i32_1 = arith.constant 0 : i32
    return %c0_i32, %c0_i32_0 : i32, i32
  }
  func.func @transform_2(%arg0: i32) -> (i32, i32) {
    %c0_i32 = arith.constant 0 : i32
    %c0_i32_0 = arith.constant 0 : i32
    %c0_i32_1 = arith.constant 0 : i32
    return %c0_i32, %c0_i32_0 : i32, i32
  }
  func.func @transform_3(%arg0: i32) -> (i32, i32) {
    %c0_i32 = arith.constant 0 : i32
    %c0_i32_0 = arith.constant 0 : i32
    %c0_i32_1 = arith.constant 0 : i32
    return %c0_i32, %c0_i32_0 : i32, i32
  }
  func.func @transform_4(%arg0: i32) -> (i32, i32) {
    %c0_i32 = arith.constant 0 : i32
    %c0_i32_0 = arith.constant 0 : i32
    %c0_i32_1 = arith.constant 0 : i32
    return %c0_i32, %c0_i32_0 : i32, i32
  }
  func.func @transform_5(%arg0: i32) -> (i32, i32) {
    %c0_i32 = arith.constant 0 : i32
    %c0_i32_0 = arith.constant 0 : i32
    return %arg0, %c0_i32 : i32, i32
  }
}

</mosaic_0001>

<llo_original>
// kernel: tpu_custom_call.1
$region0: #{tpu_custom_call.1}
  #allocation0 [shape = 'u32[]', space=smem, size = 0x4, offset = 0x4, fixed_abs, tag = 'smem constant byte address 0x4 - core index']
  #allocation1 [shape = 'u32[144,128]{1,0:T(1,128)}', space=vmem, size = 0x12000, scoped, tag = 'internal scratch']
  %s0 = inlined_call_operand.hbm [shape: f32[8,16], index: 0, kind: input, shape index: {}]
  %s1 = inlined_call_operand.hbm [shape: f32[144,128], index: 1, kind: input, shape index: {}]
  %s2 = inlined_call_operand.hbm [shape: f32[128,128], index: 2, kind: input, shape index: {}]
  %s3 = inlined_call_operand.hbm [shape: f32[8,128], index: 3, kind: input, shape index: {}]
  %s4 = inlined_call_operand.vmem [shape: f32[1,128], index: 4, kind: input, shape index: {}]
  %s5 = inlined_call_operand.hbm [shape: f32[8,24], index: 5, kind: output, shape index: {}]
  %s6 = sld [smem:[#allocation0]]
  $region46: #{tpu_custom_call.1} parent=0
    _
  %s8 = ssub.s32 1, %s6
  %s9 = scalar_select 0, %s8, %s6
  $region1: #{tpu_custom_call.1} parent=0
    #allocation2 [shape = 'u8[4096]{0}', space=vmem, size = 0x1000, scoped, tag = 'input window, operand 0, single buffered']
    #allocation3 [shape = 's32[1]{0}', space=sflag, size = 0x4, scoped, tag = 'scoped memory for tpu_custom_call.1']
    #allocation4 [shape = 's32[1]{0}', space=sflag, size = 0x4, scoped, tag = 'scoped memory for tpu_custom_call.1']
    #allocation5 [shape = 'u8[73728]{0}', space=vmem, size = 0x12000, scoped, tag = 'input window, operand 1, single buffered']
    #allocation6 [shape = 's32[1]{0}', space=sflag, size = 0x4, scoped, tag = 'scoped memory for tpu_custom_call.1']
    #allocation7 [shape = 'u8[65536]{0}', space=vmem, size = 0x10000, scoped, tag = 'input window, operand 2, single buffered']
    #allocation8 [shape = 'u8[4096]{0}', space=vmem, size = 0x1000, scoped, tag = 'input window, operand 3, single buffered']
    #allocation9 [shape = 's32[1]{0}', space=sflag, size = 0x4, scoped, tag = 'scoped memory for tpu_custom_call.1']
    #allocation10 [shape = 'u8[4096]{0}', space=vmem, size = 0x1000, scoped, tag = 'output window, operand 0, single buffered']
    %10 = vsyncpa [#allocation3], 0
    %11 = vsyncpa [#allocation6], 0
    %12 = vsyncpa [#allocation9], 0
    %13 = vsyncpa [#allocation4], 0
    // Predicated region
    $region2: #{tpu_custom_call.1} parent=1 // pred_check
      _
    $region3: #{tpu_custom_call.1} parent=1 // pred_check_branch
      %15 = sbr.rel (0) target = $region5
    $region4: #{tpu_custom_call.1} parent=1 // pred_region
      %s17 = ssub.s32 128, 128
      %18 = vsyncadd [#allocation3], %s17
      %s20 = sshll.u32 [#allocation2], 4
      %s21 = int_to_ptr.vmem [resolvable:$true] %s20
      %23 = dma.hbm_to_vmem [thread:$0]  %s0, 128, %s21, [#allocation3]
    $region5: #{tpu_custom_call.1} parent=1 // pred_fallthru
      _
    // Predicated region
    $region6: #{tpu_custom_call.1} parent=1 // pred_check
      _
    $region7: #{tpu_custom_call.1} parent=1 // pred_check_branch
      %25 = sbr.rel (0) target = $region9
    $region8: #{tpu_custom_call.1} parent=1 // pred_region
      %s27 = ssub.s32 2304, 2304
      %28 = vsyncadd [#allocation6], %s27
      %s29 = sshll.u32 [#allocation5], 4
      %s30 = int_to_ptr.vmem [resolvable:$true] %s29
      %35 = dma.hbm_to_vmem [thread:$0]  %s1, 2304, %s30, [#allocation6], 128, 128, 8
    $region9: #{tpu_custom_call.1} parent=1 // pred_fallthru
      _
    // Predicated region
    $region10: #{tpu_custom_call.1} parent=1 // pred_check
      _
    $region11: #{tpu_custom_call.1} parent=1 // pred_check_branch
      %37 = sbr.rel (0) target = $region13
    $region12: #{tpu_custom_call.1} parent=1 // pred_region
      %s39 = ssub.s32 2048, 2048
      %40 = vsyncadd [#allocation6], %s39
      %s41 = sshll.u32 [#allocation7], 4
      %s42 = int_to_ptr.vmem [resolvable:$true] %s41
      %47 = dma.hbm_to_vmem [thread:$0]  %s2, 2048, %s42, [#allocation6], 128, 128, 8
    $region13: #{tpu_custom_call.1} parent=1 // pred_fallthru
      _
    // Predicated region
    $region14: #{tpu_custom_call.1} parent=1 // pred_check
      _
    $region15: #{tpu_custom_call.1} parent=1 // pred_check_branch
      %49 = sbr.rel (0) target = $region17
    $region16: #{tpu_custom_call.1} parent=1 // pred_region
      %s51 = ssub.s32 128, 128
      %52 = vsyncadd [#allocation9], %s51
      %s54 = sshll.u32 [#allocation8], 4
      %s55 = int_to_ptr.vmem [resolvable:$true] %s54
      %57 = dma.hbm_to_vmem [thread:$0]  %s3, 128, %s55, [#allocation9]
    $region17: #{tpu_custom_call.1} parent=1 // pred_fallthru
      _
    // Predicated region
    $region18: #{tpu_custom_call.1} parent=1 // pred_check
      _
    $region19: #{tpu_custom_call.1} parent=1 // pred_check_branch
      %59 = sbr.rel (0) target = $region21
    $region20: #{tpu_custom_call.1} parent=1 // pred_region
      _
    $region21: #{tpu_custom_call.1} parent=1 // pred_fallthru
      _
    // Predicated region
    $region22: #{tpu_custom_call.1} parent=1 // pred_check
      _
    $region23: #{tpu_custom_call.1} parent=1 // pred_check_branch
      %61 = sbr.rel (0) target = $region25
    $region24: #{tpu_custom_call.1} parent=1 // pred_region
      %62 = dma.done [#allocation3], 128
    $region25: #{tpu_custom_call.1} parent=1 // pred_fallthru
      _
    // Predicated region
    $region26: #{tpu_custom_call.1} parent=1 // pred_check
      _
    $region27: #{tpu_custom_call.1} parent=1 // pred_check_branch
      %64 = sbr.rel (0) target = $region29
    $region28: #{tpu_custom_call.1} parent=1 // pred_region
      %65 = dma.done [#allocation6], 2304
    $region29: #{tpu_custom_call.1} parent=1 // pred_fallthru
      _
    // Predicated region
    $region30: #{tpu_custom_call.1} parent=1 // pred_check
      _
    $region31: #{tpu_custom_call.1} parent=1 // pred_check_branch
      %67 = sbr.rel (0) target = $region33
    $region32: #{tpu_custom_call.1} parent=1 // pred_region
      %68 = dma.done [#allocation6], 2048
    $region33: #{tpu_custom_call.1} parent=1 // pred_fallthru
      _
    // Predicated region
    $region34: #{tpu_custom_call.1} parent=1 // pred_check
      _
    $region35: #{tpu_custom_call.1} parent=1 // pred_check_branch
      %70 = sbr.rel (0) target = $region37
    $region36: #{tpu_custom_call.1} parent=1 // pred_region
      %71 = dma.done [#allocation9], 128
    $region37: #{tpu_custom_call.1} parent=1 // pred_fallthru
      _
    %v72 = vld [vmem:[#allocation2] sm:$0xff]
    %v73 = vld [vmem:[#allocation5] sm:$0xff]
    %v74 = vld [vmem:[#allocation5 + $0x8] sm:$0xff]
    %v75 = vld [vmem:[#allocation5 + $0x10] sm:$0xff]
    %v76 = vld [vmem:[#allocation5 + $0x18] sm:$0xff]
    %v77 = vld [vmem:[#allocation5 + $0x20] sm:$0xff]
    %v78 = vld [vmem:[#allocation5 + $0x28] sm:$0xff]
    %v79 = vld [vmem:[#allocation5 + $0x30] sm:$0xff]
    %v80 = vld [vmem:[#allocation5 + $0x38] sm:$0xff]
    %v81 = vld [vmem:[#allocation5 + $0x40] sm:$0xff]
    %v82 = vld [vmem:[#allocation5 + $0x48] sm:$0xff]
    %v83 = vld [vmem:[#allocation5 + $0x50] sm:$0xff]
    %v84 = vld [vmem:[#allocation5 + $0x58] sm:$0xff]
    %v85 = vld [vmem:[#allocation5 + $0x60] sm:$0xff]
    %v86 = vld [vmem:[#allocation5 + $0x68] sm:$0xff]
    %v87 = vld [vmem:[#allocation5 + $0x70] sm:$0xff]
    %v88 = vld [vmem:[#allocation5 + $0x78] sm:$0xff]
    %v89 = vld [vmem:[#allocation5 + $0x80] sm:$0xff]
    %v90 = vld [vmem:[#allocation5 + $0x88] sm:$0xff]
    %v91 = vld [vmem:[#allocation8] sm:$0x1]
    %v92 = vld [vmem:[#allocation8 + $0x1] sm:$0x1]
    %v93 = vlaneseq
    %v94 = vshrl.u32 %v93, 7
    %v95 = vsub.s32 0, %v94
    %v96 = vrot.slane %v91, %v95
    %vm97 = vcmask 130048
    %v99 = vsel %vm97, %v72, 0
    %101 = vmatprep.subr.mxu0 0.0
    %102 = vmatpush1.msra.mxu0 0.0
    %103 = vmatprep.subr.mxu0 0.0
    %104 = vmatpush1.msra.mxu0 0.0
    %105 = vmatprep.subr.mxu0 0.0
    %106 = vmatpush1.msra.mxu0 0.0
    %107 = vmatprep.subr.mxu0 0.0
    %108 = vmatpush1.msra.mxu0 0.0
    %109 = vmatprep.subr.mxu0 0.0
    %110 = vmatpush1.msra.mxu0 0.0
    %111 = vmatprep.subr.mxu0 0.0
    %112 = vmatpush1.msra.mxu0 0.0
    %113 = vmatprep.subr.mxu0 0.0
    %114 = vmatpush1.msra.mxu0 0.0
    %115 = vmatprep.subr.mxu0 0.0
    %116 = vmatpush1.msra.mxu0 0.0
    %117 = vmatprep.subr.mxu0 0.0
    %118 = vmatpush1.msra.mxu0 0.0
    %119 = vmatprep.subr.mxu0 0.0
    %120 = vmatpush1.msra.mxu0 0.0
    %121 = vmatprep.subr.mxu0 0.0
    %122 = vmatpush1.msra.mxu0 0.0
    %123 = vmatprep.subr.mxu0 0.0
    %124 = vmatpush1.msra.mxu0 0.0
    %125 = vmatprep.subr.mxu0 0.0
    %126 = vmatpush1.msra.mxu0 0.0
    %127 = vmatprep.subr.mxu0 0.0
    %128 = vmatpush1.msra.mxu0 0.0
    %129 = vmatprep.subr.mxu0 0.0
    %130 = vmatpush1.msra.mxu0 %v74
    %131 = vmatprep.subr.mxu0 0.0
    %132 = vmatpush1.msra.mxu0 %v73
    %133 = vmatprep.subr.mxu0 0.0
    %134 = vmatpush2.msra.mxu0 0.0
    %135 = vmatprep.subr.mxu0 0.0
    %136 = vmatpush2.msra.mxu0 0.0
    %137 = vmatprep.subr.mxu0 0.0
    %138 = vmatpush2.msra.mxu0 0.0
    %139 = vmatprep.subr.mxu0 0.0
    %140 = vmatpush2.msra.mxu0 0.0
    %141 = vmatprep.subr.mxu0 0.0
    %142 = vmatpush2.msra.mxu0 0.0
    %143 = vmatprep.subr.mxu0 0.0
    %144 = vmatpush2.msra.mxu0 0.0
    %145 = vmatprep.subr.mxu0 0.0
    %146 = vmatpush2.msra.mxu0 0.0
    %147 = vmatprep.subr.mxu0 0.0
    %148 = vmatpush2.msra.mxu0 0.0
    %149 = vmatprep.subr.mxu0 0.0
    %150 = vmatpush2.msra.mxu0 0.0
    %151 = vmatprep.subr.mxu0 0.0
    %152 = vmatpush2.msra.mxu0 0.0
    %153 = vmatprep.subr.mxu0 0.0
    %154 = vmatpush2.msra.mxu0 0.0
    %155 = vmatprep.subr.mxu0 0.0
    %156 = vmatpush2.msra.mxu0 0.0
    %157 = vmatprep.subr.mxu0 0.0
    %158 = vmatpush2.msra.mxu0 0.0
    %159 = vmatprep.subr.mxu0 0.0
    %160 = vmatpush2.msra.mxu0 0.0
    %161 = vmatprep.subr.mxu0 0.0
    %162 = vmatpush2.msra.mxu0 0.0
    %163 = vmatprep.subr.mxu0 0.0
    %164 = vmatpush2.msra.mxu0 0.0
    %165 = vmatprep.mubr.f32.mxu0 0.0
    %166 = vmatmul.mubr.f32.gmra.mxu0 %v99
    %v167 = vpop.f32.mrf.mxu0
    %v168 = vadd.f32 %v96, %v167
    %v169 = vpop.f32.mrf.mxu0
    %170 = vdwg.mxu0
    %v171 = vmax.f32 %v168, 0.0
    %v172 = vlaneseq
    %v173 = vshrl.u32 %v172, 7
    %v174 = vsub.s32 0, %v173
    %v175 = vrot.slane %v92, %v174
    %176 = vmatprep.subr.mxu0 0.0
    %177 = vmatpush1.msra.mxu0 %v90
    %178 = vmatprep.subr.mxu0 0.0
    %179 = vmatpush1.msra.mxu0 %v89
    %180 = vmatprep.subr.mxu0 0.0
    %181 = vmatpush1.msra.mxu0 %v88
    %182 = vmatprep.subr.mxu0 0.0
    %183 = vmatpush1.msra.mxu0 %v87
    %184 = vmatprep.subr.mxu0 0.0
    %185 = vmatpush1.msra.mxu0 %v86
    %186 = vmatprep.subr.mxu0 0.0
    %187 = vmatpush1.msra.mxu0 %v85
    %188 = vmatprep.subr.mxu0 0.0
    %189 = vmatpush1.msra.mxu0 %v84
    %190 = vmatprep.subr.mxu0 0.0
    %191 = vmatpush1.msra.mxu0 %v83
    %192 = vmatprep.subr.mxu0 0.0
    %193 = vmatpush1.msra.mxu0 %v82
    %194 = vmatprep.subr.mxu0 0.0
    %195 = vmatpush1.msra.mxu0 %v81
    %196 = vmatprep.subr.mxu0 0.0
    %197 = vmatpush1.msra.mxu0 %v80
    %198 = vmatprep.subr.mxu0 0.0
    %199 = vmatpush1.msra.mxu0 %v79
    %200 = vmatprep.subr.mxu0 0.0
    %201 = vmatpush1.msra.mxu0 %v78
    %202 = vmatprep.subr.mxu0 0.0
    %203 = vmatpush1.msra.mxu0 %v77
    %204 = vmatprep.subr.mxu0 0.0
    %205 = vmatpush1.msra.mxu0 %v76
    %206 = vmatprep.subr.mxu0 0.0
    %207 = vmatpush1.msra.mxu0 %v75
    %208 = vmatprep.subr.mxu0 0.0
    %209 = vmatpush2.msra.mxu0 0.0
    %210 = vmatprep.subr.mxu0 0.0
    %211 = vmatpush2.msra.mxu0 0.0
    %212 = vmatprep.subr.mxu0 0.0
    %213 = vmatpush2.msra.mxu0 0.0
    %214 = vmatprep.subr.mxu0 0.0
    %215 = vmatpush2.msra.mxu0 0.0
    %216 = vmatprep.subr.mxu0 0.0
    %217 = vmatpush2.msra.mxu0 0.0
    %218 = vmatprep.subr.mxu0 0.0
    %219 = vmatpush2.msra.mxu0 0.0
    %220 = vmatprep.subr.mxu0 0.0
    %221 = vmatpush2.msra.mxu0 0.0
    %222 = vmatprep.subr.mxu0 0.0
    %223 = vmatpush2.msra.mxu0 0.0
    %224 = vmatprep.subr.mxu0 0.0
    %225 = vmatpush2.msra.mxu0 0.0
    %226 = vmatprep.subr.mxu0 0.0
    %227 = vmatpush2.msra.mxu0 0.0
    %228 = vmatprep.subr.mxu0 0.0
    %229 = vmatpush2.msra.mxu0 0.0
    %230 = vmatprep.subr.mxu0 0.0
    %231 = vmatpush2.msra.mxu0 0.0
    %232 = vmatprep.subr.mxu0 0.0
    %233 = vmatpush2.msra.mxu0 0.0
    %234 = vmatprep.subr.mxu0 0.0
    %235 = vmatpush2.msra.mxu0 0.0
    %236 = vmatprep.subr.mxu0 0.0
    %237 = vmatpush2.msra.mxu0 0.0
    %238 = vmatprep.subr.mxu0 0.0
    %239 = vmatpush2.msra.mxu0 0.0
    %240 = vmatprep.mubr.f32.mxu0 0.0
    %241 = vmatmul.mubr.f32.gmra.mxu0 %v171
    %v242 = vpop.f32.mrf.mxu0
    %v243 = vadd.f32 %v175, %v242
    %v244 = vpop.f32.mrf.mxu0
    %245 = vdwg.mxu0
    %v246 = vmax.f32 %v243, 0.0
    %v247 = vld [vmem:[#allocation7] sm:$0xff]
    %v248 = vld [vmem:[#allocation7 + $0x8] sm:$0xff]
    %v249 = vld [vmem:[#allocation7 + $0x10] sm:$0xff]
    %v250 = vld [vmem:[#allocation7 + $0x18] sm:$0xff]
    %v251 = vld [vmem:[#allocation7 + $0x20] sm:$0xff]
    %v252 = vld [vmem:[#allocation7 + $0x28] sm:$0xff]
    %v253 = vld [vmem:[#allocation7 + $0x30] sm:$0xff]
    %v254 = vld [vmem:[#allocation7 + $0x38] sm:$0xff]
    %v255 = vld [vmem:[#allocation7 + $0x40] sm:$0xff]
    %v256 = vld [vmem:[#allocation7 + $0x48] sm:$0xff]
    %v257 = vld [vmem:[#allocation7 + $0x50] sm:$0xff]
    %v258 = vld [vmem:[#allocation7 + $0x58] sm:$0xff]
    %v259 = vld [vmem:[#allocation7 + $0x60] sm:$0xff]
    %v260 = vld [vmem:[#allocation7 + $0x68] sm:$0xff]
    %v261 = vld [vmem:[#allocation7 + $0x70] sm:$0xff]
    %v262 = vld [vmem:[#allocation7 + $0x78] sm:$0xff]
    %v263 = vld [vmem:[%s4] sm:$0x1]
    %v265 = vlaneseq
    %v266 = vshrl.u32 %v265, 7
    %v267 = vsub.s32 0, %v266
    %v268 = vrot.slane %v263, %v267
    %270 = vmatprep.subr.mxu0 0.0
    %271 = vmatpush1.msra.mxu0 %v262
    %272 = vmatprep.subr.mxu0 0.0
    %273 = vmatpush1.msra.mxu0 %v261
    %274 = vmatprep.subr.mxu0 0.0
    %275 = vmatpush1.msra.mxu0 %v260
    %276 = vmatprep.subr.mxu0 0.0
    %277 = vmatpush1.msra.mxu0 %v259
    %278 = vmatprep.subr.mxu0 0.0
    %279 = vmatpush1.msra.mxu0 %v258
    %280 = vmatprep.subr.mxu0 0.0
    %281 = vmatpush1.msra.mxu0 %v257
    %282 = vmatprep.subr.mxu0 0.0
    %283 = vmatpush1.msra.mxu0 %v256
    %284 = vmatprep.subr.mxu0 0.0
    %285 = vmatpush1.msra.mxu0 %v255
    %286 = vmatprep.subr.mxu0 0.0
    %287 = vmatpush1.msra.mxu0 %v254
    %288 = vmatprep.subr.mxu0 0.0
    %289 = vmatpush1.msra.mxu0 %v253
    %290 = vmatprep.subr.mxu0 0.0
    %291 = vmatpush1.msra.mxu0 %v252
    %292 = vmatprep.subr.mxu0 0.0
    %293 = vmatpush1.msra.mxu0 %v251
    %294 = vmatprep.subr.mxu0 0.0
    %295 = vmatpush1.msra.mxu0 %v250
    %296 = vmatprep.subr.mxu0 0.0
    %297 = vmatpush1.msra.mxu0 %v249
    %298 = vmatprep.subr.mxu0 0.0
    %299 = vmatpush1.msra.mxu0 %v248
    %300 = vmatprep.subr.mxu0 0.0
    %301 = vmatpush1.msra.mxu0 %v247
    %302 = vmatprep.subr.mxu0 0.0
    %303 = vmatpush2.msra.mxu0 0.0
    %304 = vmatprep.subr.mxu0 0.0
    %305 = vmatpush2.msra.mxu0 0.0
    %306 = vmatprep.subr.mxu0 0.0
    %307 = vmatpush2.msra.mxu0 0.0
    %308 = vmatprep.subr.mxu0 0.0
    %309 = vmatpush2.msra.mxu0 0.0
    %310 = vmatprep.subr.mxu0 0.0
    %311 = vmatpush2.msra.mxu0 0.0
    %312 = vmatprep.subr.mxu0 0.0
    %313 = vmatpush2.msra.mxu0 0.0
    %314 = vmatprep.subr.mxu0 0.0
    %315 = vmatpush2.msra.mxu0 0.0
    %316 = vmatprep.subr.mxu0 0.0
    %317 = vmatpush2.msra.mxu0 0.0
    %318 = vmatprep.subr.mxu0 0.0
    %319 = vmatpush2.msra.mxu0 0.0
    %320 = vmatprep.subr.mxu0 0.0
    %321 = vmatpush2.msra.mxu0 0.0
    %322 = vmatprep.subr.mxu0 0.0
    %323 = vmatpush2.msra.mxu0 0.0
    %324 = vmatprep.subr.mxu0 0.0
    %325 = vmatpush2.msra.mxu0 0.0
    %326 = vmatprep.subr.mxu0 0.0
    %327 = vmatpush2.msra.mxu0 0.0
    %328 = vmatprep.subr.mxu0 0.0
    %329 = vmatpush2.msra.mxu0 0.0
    %330 = vmatprep.subr.mxu0 0.0
    %331 = vmatpush2.msra.mxu0 0.0
    %332 = vmatprep.subr.mxu0 0.0
    %333 = vmatpush2.msra.mxu0 0.0
    %334 = vmatprep.mubr.f32.mxu0 0.0
    %335 = vmatmul.mubr.f32.gmra.mxu0 %v246
    %v336 = vpop.f32.mrf.mxu0
    %v337 = vadd.f32 %v268, %v336
    %v338 = vpop.f32.mrf.mxu0
    %339 = vdwg.mxu0
    %vm340 = vcmask 195584
    %341 = vst.msk [vmem:[#allocation10] sm:$0xff] %vm340, %v337
    // Predicated region
    $region38: #{tpu_custom_call.1} parent=1 // pred_check
      _
    $region39: #{tpu_custom_call.1} parent=1 // pred_check_branch
      %343 = sbr.rel (0) target = $region41
    $region40: #{tpu_custom_call.1} parent=1 // pred_region
      %s345 = ssub.s32 128, 128
      %346 = vsyncadd [#allocation4], %s345
      %s348 = sshll.u32 [#allocation10], 4
      %s349 = int_to_ptr.vmem [resolvable:$true] %s348
      %351 = dma.vmem_to_hbm [thread:$0]  %s349, 128, %s5, [#allocation4]
    $region41: #{tpu_custom_call.1} parent=1 // pred_fallthru
      _
    // Predicated region
    $region42: #{tpu_custom_call.1} parent=1 // pred_check
      _
    $region43: #{tpu_custom_call.1} parent=1 // pred_check_branch
      %353 = sbr.rel (0) target = $region45
    $region44: #{tpu_custom_call.1} parent=1 // pred_region
      %354 = dma.done [#allocation4], 128
    $region45: #{tpu_custom_call.1} parent=1 // pred_fallthru
      _
    %355 = vsyncpa [#allocation3], 1
    %356 = vsyncpa [#allocation6], 1
    %357 = vsyncpa [#allocation9], 1
    %358 = vsyncpa [#allocation4], 1

</llo_original>
